<compile_context>
chip_gen: v7x
topology: tpu7x:2x2x1
jax: 0.10.0
libtpu: 0.0.40
codegen_flags: <defaults>
</compile_context>

<pallas_src>
import math
import jax
import jax.numpy as jnp
from jax.experimental import pallas as pl
from jax.experimental.pallas import tpu as pltpu


# ----------------------------------------------------------------------------
# Kernel
# ----------------------------------------------------------------------------
def _patch_embed_kernel(p_ref, w_ref, b_ref, o_ref, acc_ref):
    # p_ref:   (tm, kt)        patch tile (bf16/f32)
    # w_ref:   (kt, d_model)   K-major weight tile -> canonical MXU RHS
    # b_ref:   (1, d_model)    f32 bias (grid-invariant)
    # o_ref:   (tm, d_model)   output tile (written on the last K step)
    # acc_ref: (tm, d_model)   f32 accumulator scratch
    k = pl.program_id(1)

    @pl.when(k == 0)
    def _init():
        acc_ref[...] = jnp.zeros_like(acc_ref)

    acc_ref[...] += jnp.dot(p_ref[...], w_ref[...],
                            preferred_element_type=jnp.float32)

    @pl.when(k == pl.num_programs(1) - 1)
    def _finalize():
        o_ref[...] = (acc_ref[...] + b_ref[...]).astype(o_ref.dtype)


# ----------------------------------------------------------------------------
# Tiling helpers (generation-aware)
# ----------------------------------------------------------------------------
def _round_up(x, m):
    return ((x + m - 1) // m) * m


def _vmem_capacity_bytes():
    try:
        info = pltpu.get_tpu_info()
        cap = getattr(info, "vmem_capacity_bytes", None)
        if cap:
            return int(cap)
    except Exception:
        pass
    return 64 << 20  # conservative fallback: v7x per-TensorCore VMEM


def _num_tensorcores():
    # v5e / v6e expose a single TensorCore per device; v4/v5p/v7x have 2.
    try:
        kind = (jax.devices()[0].device_kind or "").lower()
    except Exception:
        return 2
    if "lite" in kind or "v5e" in kind or "v6e" in kind:
        return 1
    return 2  # default: splitting a tiny input costs at most ~0.35us if wrong


def _choose_tiles(M, K_pad, d_model, in_bytes, out_bytes, budget, row_align,
                  num_tc):
    """Pick (tm, kt).  Large row tiles amortize the ~0.35us/step overhead and
    fill the MXU along M; kt < K_pad (K tiling) is only used when the weight
    tile + row tile no longer fit the per-generation VMEM budget."""

    def footprint(tm, kt):
        return (2 * tm * kt * in_bytes            # patch tile, double-buffered
                + 2 * kt * d_model * in_bytes     # weight tile, double-buffered
                + 2 * tm * d_model * out_bytes    # output tile, double-buffered
                + tm * d_model * 4                # f32 accumulator scratch
                + 2 * max(d_model, 128) * 4)      # bias (tiny)

    tm = 1024 if budget >= (80 << 20) else 512
    kt = K_pad
    while footprint(tm, kt) > budget and tm > 256:
        tm //= 2
    while footprint(tm, kt) > budget and kt > 128:      # K-tiling fallback
        kt = max(128, _round_up(kt // 2, 128))
    while footprint(tm, kt) > budget and tm > row_align:
        tm = max(row_align, tm // 2)

    if M <= tm:
        # Tiny input: split into 2 steps only when there are 2 TensorCores to
        # feed; on 1-TC chips the grid is a serial loop and splitting only
        # adds per-step overhead.
        if num_tc >= 2 and M > row_align:
            tm = _round_up(pl.cdiv(M, 2), row_align)
        else:
            tm = _round_up(M, row_align)
        return tm, kt

    # Prefer a row tile that divides M exactly (avoids padding + out[:M] copy).
    t = tm
    lo = max(row_align, tm // 2)
    while t >= lo:
        if M % t == 0:
            tm = t
            break
        t -= row_align

    # Load-balance 2 TensorCores when the step count is small and odd.
    steps = pl.cdiv(M, tm)
    if num_tc >= 2 and steps < 8 and steps % 2 == 1:
        tm2 = _round_up(pl.cdiv(M, steps + 1), row_align)
        if tm2 >= row_align and footprint(tm2, kt) <= budget:
            tm = tm2
    return tm, kt


# ----------------------------------------------------------------------------
# Wrapper
# ----------------------------------------------------------------------------
def poiemb_pallas(x, weight, bias, t_patch_size, patch_size,
                  compute_dtype=jnp.bfloat16, out_dtype=None):
    """x: (N, C, T, H, W); weight: (d_model, C, kt, kh, kw); bias: (d_model,).

    Returns (N, T'*H'*W', d_model), matching Poiemb.forward (tokens t-major
    then spatial; features flattened in Conv3d's (C, kt, kh, kw) order).
    """
    N, C, T, H, W = x.shape
    d_model = weight.shape[0]
    Tp, Hp, Wp = T // t_patch_size, H // patch_size, W // patch_size
    K = C * t_patch_size * patch_size * patch_size
    L = Tp * Hp * Wp
    M = N * L
    out_dtype = x.dtype if out_dtype is None else out_dtype

    # Conv3d with stride == kernel silently drops any trailing remainder.
    x = x[:, :, :Tp * t_patch_size, :Hp * patch_size, :Wp * patch_size]

    # --- layout plumbing: non-overlapping patches -> (M, K) slab.
    # allow_input_fusion below lets XLA fuse this transpose/cast/pad into the
    # pallas_call input DMA (no separate im2col HBM round trip).
    xp = x.reshape(N, C, Tp, t_patch_size, Hp, patch_size, Wp, patch_size)
    xp = jnp.transpose(xp, (0, 2, 4, 6, 1, 3, 5, 7))
    patches = xp.reshape(M, K).astype(compute_dtype)

    # Weight relayouted once to (K, d_model): canonical MXU contraction, no
    # per-step in-kernel transpose; d_model lands on the lane axis of RHS/out.
    w2d = jnp.transpose(weight.reshape(d_model, K)).astype(compute_dtype)
    b2d = bias.reshape(1, d_model).astype(jnp.float32)

    in_bytes = jnp.dtype(compute_dtype).itemsize
    out_bytes = jnp.dtype(out_dtype).itemsize
    row_align = 16 if in_bytes == 2 else 8

    vmem_cap = _vmem_capacity_bytes()
    budget = (vmem_cap * 3) // 4          # ~48 MiB on v7x, ~96 MiB on v5e/v6e
    num_tc = _num_tensorcores()

    K_pad = _round_up(max(K, 128), 128)   # keep lane axes fully dense
    tm, kt = _choose_tiles(M, K_pad, d_model, in_bytes, out_bytes,
                           budget, row_align, num_tc)
    nk = pl.cdiv(K_pad, kt)
    K_final = nk * kt
    nm = pl.cdiv(M, tm)
    M_pad = nm * tm

    if M_pad != M or K_final != K:
        patches = jnp.pad(patches, ((0, M_pad - M), (0, K_final - K)))
    if K_final != K:
        w2d = jnp.pad(w2d, ((0, K_final - K), (0, 0)))

    footprint = (2 * tm * kt * in_bytes + 2 * kt * d_model * in_bytes
                 + 2 * tm * d_model * out_bytes + tm * d_model * 4
                 + 2 * max(d_model, 128) * 4)
    vmem_limit = int(min(vmem_cap - (4 << 20),
                         max(footprint + (4 << 20), 32 << 20)))

    cost = pl.CostEstimate(
        flops=2 * M_pad * K_final * d_model,
        transcendentals=0,
        bytes_accessed=(M_pad * K_final * in_bytes
                        + nm * K_final * d_model * in_bytes
                        + M_pad * d_model * out_bytes))

    # Note: if d_model < 128 the output stores are masked (vst.msk); accepted
    # since d_model is untiled and full-width.
    out = pl.pallas_call(
        _patch_embed_kernel,
        out_shape=jax.ShapeDtypeStruct((M_pad, d_model), out_dtype),
        grid_spec=pltpu.PrefetchScalarGridSpec(
            num_scalar_prefetch=0,
            grid=(nm, nk),                       # rows parallel, K reduction last
            in_specs=[
                pl.BlockSpec((tm, kt), lambda i, k: (i, k)),
                # TODO(synk): weight/bias are grid-invariant along the row axis;
                # pipeline_mode=pl.Buffered(1) would single-buffer them and free
                # ~K*d_model*in_bytes of VMEM -- kept default-buffered here for
                # lowering safety and fully accounted for in the footprint.
                pl.BlockSpec((kt, d_model), lambda i, k: (k, 0)),
                pl.BlockSpec((1, d_model), lambda i, k: (0, 0)),
            ],
            out_specs=pl.BlockSpec((tm, d_model), lambda i, k: (i, 0)),
            scratch_shapes=[pltpu.VMEM((tm, d_model), jnp.float32)],
        ),
        compiler_params=pltpu.CompilerParams(
            dimension_semantics=("parallel", "arbitrary"),
            vmem_limit_bytes=vmem_limit,
            allow_input_fusion=[True, False, False]),
        cost_estimate=cost,
    )(patches, w2d, b2d)

    if M_pad != M:
        out = out[:M]
    return out.reshape(N, L, d_model)


# ----------------------------------------------------------------------------
# Parameter init matching the PyTorch module
# ----------------------------------------------------------------------------
def init_params(key, c_in, d_model, t_patch_size, patch_size, dtype=jnp.float32):
    kw, kb = jax.random.split(key)
    fan_in = c_in * t_patch_size * patch_size * patch_size
    # kaiming_normal_(mode='fan_in', nonlinearity='leaky_relu'), default
    # negative_slope=0.01: gain = sqrt(2 / (1 + 0.01**2))
    gain = math.sqrt(2.0 / (1.0 + 0.01 ** 2))
    std = gain / math.sqrt(fan_in)
    weight = std * jax.random.normal(
        kw, (d_model, c_in, t_patch_size, patch_size, patch_size), dtype=dtype)
    # Conv3d default bias init: U(-1/sqrt(fan_in), 1/sqrt(fan_in))
    bound = 1.0 / math.sqrt(fan_in)
    bias = jax.random.uniform(kb, (d_model,), dtype=dtype,
                              minval=-bound, maxval=bound)
    return weight, bias


if __name__ == "__main__":
    key = jax.random.PRNGKey(0)
    k_x, k_p = jax.random.split(key)

    # Small shapes consistent with the module's forward.
    N, c_in, T, H, W = 2, 4, 8, 16, 16
    d_model, t_patch_size, patch_size = 32, 2, 4

    x = jax.random.normal(k_x, (N, c_in, T, H, W), dtype=jnp.float32)
    weight, bias = init_params(k_p, c_in, d_model, t_patch_size, patch_size)

    out = poiemb_pallas(x, weight, bias, t_patch_size, patch_size)
    out = jax.block_until_ready(out)

    # --- reference (same patch-embedding math as Conv3d + flatten + einsum) ---
    Tp, Hp, Wp = T // t_patch_size, H // patch_size, W // patch_size
    K = c_in * t_patch_size * patch_size * patch_size
    L = Tp * Hp * Wp
    xp = x.reshape(N, c_in, Tp, t_patch_size, Hp, patch_size, Wp, patch_size)
    xp = jnp.transpose(xp, (0, 2, 4, 6, 1, 3, 5, 7)).reshape(N * L, K)
    w2d = weight.reshape(d_model, K)

    # (a) tight check against a reference using the same bf16 operand rounding.
    p_bf = xp.astype(jnp.bfloat16).astype(jnp.float32)
    w_bf = w2d.astype(jnp.bfloat16).astype(jnp.float32)
    ref_bf = (jnp.dot(p_bf, w_bf.T, precision=jax.lax.Precision.HIGHEST)
              + bias).reshape(N, L, d_model)
    # (b) loose sanity check against the full-f32 reference.
    ref_f32 = (jnp.dot(xp, w2d.T, precision=jax.lax.Precision.HIGHEST)
               + bias).reshape(N, L, d_model)

    assert out.shape == (N, L, d_model)
    assert jnp.allclose(out, ref_bf, atol=2e-4, rtol=2e-4)
    assert jnp.allclose(out, ref_f32, atol=5e-2, rtol=5e-2)
    print("KERNEL_OK")
</pallas_src>

<mosaic_0001>
module attributes {stable_mosaic.version = 11 : i64} {
  func.func @_patch_embed_kernel(%arg0: i32, %arg1: i32, %arg2: memref<64x128xbf16, #tpu.memory_space<vmem>>, %arg3: memref<128x32xbf16, #tpu.memory_space<vmem>>, %arg4: memref<1x32xf32, #tpu.memory_space<vmem>>, %arg5: memref<64x32xf32, #tpu.memory_space<vmem>>, %arg6: memref<64x32xf32, #tpu.memory_space<vmem>>) attributes {dimension_semantics = [#tpu.dimension_semantics<parallel>, #tpu.dimension_semantics<arbitrary>], iteration_bounds = array<i64: 2, 1>, scalar_prefetch = 0 : i64, scratch_operands = 1 : i64, tpu.core_type = #tpu.core_type<tc>, window_params = [{transform_indices = @transform_0, window_bounds = array<i64: 64, 128>}, {transform_indices = @transform_1, window_bounds = array<i64: 128, 32>}, {pipeline_mode = #tpu.pipeline_mode<synchronous>, transform_indices = @transform_2, window_bounds = array<i64: 1, 32>}, {transform_indices = @transform_3, window_bounds = array<i64: 64, 32>}]} {
    %c0_i32 = arith.constant 0 : i32
    %0 = arith.cmpi eq, %arg1, %c0_i32 : i32
    %1 = arith.extui %0 : i1 to i32
    %c0_i32_0 = arith.constant 0 : i32
    %2 = arith.cmpi ne, %1, %c0_i32_0 : i32
    scf.if %2 {
      %cst_10 = arith.constant 0.000000e+00 : f32
      %12 = vector.broadcast %cst_10 : f32 to vector<64x32xf32>
      %c0_11 = arith.constant 0 : index
      %c0_12 = arith.constant 0 : index
      %13 = vector.load %arg6[%c0_11, %c0_12] : memref<64x32xf32, #tpu.memory_space<vmem>>, vector<64x32xf32>
      tpu.vector_store %arg6[%c0_11, %c0_12], %12 {strides = array<i32>} : memref<64x32xf32, #tpu.memory_space<vmem>>, vector<64x32xf32>,
    } else {
    }
    %c0 = arith.constant 0 : index
    %c0_1 = arith.constant 0 : index
    %3 = vector.load %arg6[%c0, %c0_1] : memref<64x32xf32, #tpu.memory_space<vmem>>, vector<64x32xf32>
    %c0_2 = arith.constant 0 : index
    %c0_3 = arith.constant 0 : index
    %4 = vector.load %arg2[%c0_2, %c0_3] : memref<64x128xbf16, #tpu.memory_space<vmem>>, vector<64x128xbf16>
    %c0_4 = arith.constant 0 : index
    %c0_5 = arith.constant 0 : index
    %5 = vector.load %arg3[%c0_4, %c0_5] : memref<128x32xbf16, #tpu.memory_space<vmem>>, vector<128x32xbf16>
    %cst = arith.constant dense<0.000000e+00> : vector<64x32xf32>
    %6 = tpu.matmul %4, %5, %cst {dimension_numbers = #tpu.dot_dimension_numbers<[1], [0], [0], [1], [0, 0, 1, 1], [], []>} : vector<64x128xbf16>, vector<128x32xbf16>, vector<64x32xf32> -> vector<64x32xf32>
    %7 = arith.addf %3, %6 : vector<64x32xf32>
    %c0_6 = arith.constant 0 : index
    %c0_7 = arith.constant 0 : index
    %8 = vector.load %arg6[%c0_6, %c0_7] : memref<64x32xf32, #tpu.memory_space<vmem>>, vector<64x32xf32>
    tpu.vector_store %arg6[%c0_6, %c0_7], %7 {strides = array<i32>} : memref<64x32xf32, #tpu.memory_space<vmem>>, vector<64x32xf32>,
    %c0_i32_8 = arith.constant 0 : i32
    %9 = arith.cmpi eq, %arg1, %c0_i32_8 : i32
    %10 = arith.extui %9 : i1 to i32
    %c0_i32_9 = arith.constant 0 : i32
    %11 = arith.cmpi ne, %10, %c0_i32_9 : i32
    scf.if %11 {
      %c0_10 = arith.constant 0 : index
      %c0_11 = arith.constant 0 : index
      %12 = vector.load %arg6[%c0_10, %c0_11] : memref<64x32xf32, #tpu.memory_space<vmem>>, vector<64x32xf32>
      %c0_12 = arith.constant 0 : index
      %c0_13 = arith.constant 0 : index
      %13 = vector.load %arg4[%c0_12, %c0_13] : memref<1x32xf32, #tpu.memory_space<vmem>>, vector<1x32xf32>
      %14 = vector.broadcast %13 : vector<1x32xf32> to vector<64x32xf32>
      %15 = arith.addf %12, %14 : vector<64x32xf32>
      %c0_14 = arith.constant 0 : index
      %c0_15 = arith.constant 0 : index
      %16 = vector.load %arg5[%c0_14, %c0_15] : memref<64x32xf32, #tpu.memory_space<vmem>>, vector<64x32xf32>
      tpu.vector_store %arg5[%c0_14, %c0_15], %15 {strides = array<i32>} : memref<64x32xf32, #tpu.memory_space<vmem>>, vector<64x32xf32>,
    } else {
    }
    return
  }
  func.func @transform_0(%arg0: i32, %arg1: i32) -> (i32, i32) {
    %c0_i32 = arith.constant 0 : i32
    return %arg0, %arg1 : i32, i32
  }
  func.func @transform_1(%arg0: i32, %arg1: i32) -> (i32, i32) {
    %c0_i32 = arith.constant 0 : i32
    %c0_i32_0 = arith.constant 0 : i32
    return %arg1, %c0_i32 : i32, i32
  }
  func.func @transform_2(%arg0: i32, %arg1: i32) -> (i32, i32) {
    %c0_i32 = arith.constant 0 : i32
    %c0_i32_0 = arith.constant 0 : i32
    %c0_i32_1 = arith.constant 0 : i32
    return %c0_i32, %c0_i32_0 : i32, i32
  }
  func.func @transform_3(%arg0: i32, %arg1: i32) -> (i32, i32) {
    %c0_i32 = arith.constant 0 : i32
    %c0_i32_0 = arith.constant 0 : i32
    return %arg0, %c0_i32 : i32, i32
  }
}

</mosaic_0001>

<llo_original>
// kernel: tpu_custom_call.1
$region0: #{tpu_custom_call.1}
  #allocation0 [shape = 'u32[]', space=smem, size = 0x4, offset = 0x4, fixed_abs, tag = 'smem constant byte address 0x4 - core index']
  #allocation1 [shape = 'u32[144,128]{1,0:T(1,128)}', space=vmem, size = 0x12000, scoped, tag = 'internal scratch']
  #allocation2 [shape = 'f32[64,32]{1,0:T(8,128)}', space=vmem, size = 0x8000, scoped, tag = 'scratch operand']
  %s0 = inlined_call_operand.vmem [shape: bf16[128,128], index: 0, kind: input, shape index: {}]
  %s1 = inlined_call_operand.vmem [shape: bf16[128,32], index: 1, kind: input, shape index: {}]
  %s2 = inlined_call_operand.vmem [shape: f32[1,32], index: 2, kind: input, shape index: {}]
  %s3 = inlined_call_operand.vmem [shape: f32[128,32], index: 3, kind: output, shape index: {}]
  %s4 = sld [smem:[#allocation0]]
  $region53: #{tpu_custom_call.1} parent=0
    _
  %s6 = ssub.s32 1, %s4
  %s7 = scalar_select 0, %s6, %s4
  loop: start=0, step=1, limit=4
  $region2: #{tpu_custom_call.1} parent=0 // loop_pre_header
    _
  $region3: #{tpu_custom_call.1} parent=0 // loop_header
    %s9 = sphi 0, %s13
    %p10 = scmp.ge.s32.totalorder %s9, 4
    %s16 = sphi 0, %s28
    %s17 = sphi 0, %s24
    %s18 = sphi 0, %s16
    %s19 = sphi 0, %s17
    %s20 = sphi 0, %s18
    %s21 = sphi 0, %s19
    %s33 = sphi 0, %s35
    %s36 = sphi 0, %s33
    %s37 = sphi 0, %s36
    %s53 = sphi 0, %s37
    %s59 = sphi 0, %s61
    %s62 = sphi 0, %s59
    %s63 = sphi 0, %s62
    %s79 = sphi 0, %s63
    %s83 = sphi 0, %s83
    %s85 = sphi 0, %s83
    %s86 = sphi 0, %s85
    %s100 = sphi 0, %s86
    %s106 = sphi 0, %s108
    %s109 = sphi 0, %s106
    %s110 = sphi 0, %s109
    %s126 = sphi 0, %s110
  $region4: #{tpu_custom_call.1} parent=0 // loop_header_branch
    %12 = sbr.rel (%p10) target = $region8
  $region5: #{tpu_custom_call.1} parent=0 // loop_body
    %s14 = ssub.s32 %s9, 1
    %s15 = ssub.s32 %s9, 2
    %s22 = sadd.s32 1, %s17
    %p23 = scmp.ge.s32.totalorder %s22, 1
    %s24 = scalar_select %p23, 0, %s22
    %s25 = sadd.s32 1, %s16
    %s26 = scalar_select %p23, %s25, %s16
    %p27 = scmp.ge.s32.totalorder %s26, 2
    %s28 = scalar_select %p27, 0, %s26
    %s29 = ssub.s32 %s16, %s28
    %s30 = ssub.s32 %s17, %s24
    %s31 = sor.u32 %s29, %s30
    %p32 = scmp.eq.s32.totalorder %s31, 0
    %s34 = sadd.s32 %s33, 1
    %s35 = scalar_select %p32, %s33, %s34
    %p38 = pneg %p32
    %p39 = scmp.eq.s32.totalorder %s9, 1
    %p40 = por %p38, %p39
    %p41 = scmp.ne.s32.totalorder %s33, %s36
    %p42 = scmp.eq.s32.totalorder %s9, 0
    %p43 = por %p41, %p42
    %p44 = scmp.ne.s32.totalorder %s33, %s36
    %p45 = scmp.eq.s32.totalorder %s14, 1
    %p46 = por %p44, %p45
    %p47 = scmp.ne.s32.totalorder %s36, %s37
    %p48 = scmp.eq.s32.totalorder %s14, 0
    %p49 = por %p47, %p48
    %p50 = scmp.ne.s32.totalorder %s36, %s37
    %p51 = scmp.eq.s32.totalorder %s15, 1
    %p52 = por %p50, %p51
    %p54 = scmp.ne.s32.totalorder %s37, %s53
    %p55 = scmp.eq.s32.totalorder %s15, 0
    %p56 = por %p54, %p55
    %s57 = ssub.s32 %s17, %s24
    %p58 = scmp.eq.s32.totalorder %s57, 0
    %s60 = sadd.s32 %s59, 1
    %s61 = scalar_select %p58, %s59, %s60
    %p64 = pneg %p58
    %p65 = scmp.eq.s32.totalorder %s9, 1
    %p66 = por %p64, %p65
    %p67 = scmp.ne.s32.totalorder %s59, %s62
    %p68 = scmp.eq.s32.totalorder %s9, 0
    %p69 = por %p67, %p68
    %p70 = scmp.ne.s32.totalorder %s59, %s62
    %p71 = scmp.eq.s32.totalorder %s14, 1
    %p72 = por %p70, %p71
    %p73 = scmp.ne.s32.totalorder %s62, %s63
    %p74 = scmp.eq.s32.totalorder %s14, 0
    %p75 = por %p73, %p74
    %p76 = scmp.ne.s32.totalorder %s62, %s63
    %p77 = scmp.eq.s32.totalorder %s15, 1
    %p78 = por %p76, %p77
    %p80 = scmp.ne.s32.totalorder %s63, %s79
    %p81 = scmp.eq.s32.totalorder %s15, 0
    %p82 = por %p80, %p81
    %s84 = sadd.s32 %s83, 1
    %p87 = scmp.eq.s32.totalorder %s9, 1
    %p88 = scmp.ne.s32.totalorder %s83, %s85
    %p89 = scmp.eq.s32.totalorder %s9, 0
    %p90 = por %p88, %p89
    %p91 = scmp.ne.s32.totalorder %s83, %s85
    %p92 = scmp.eq.s32.totalorder %s14, 1
    %p93 = por %p91, %p92
    %p94 = scmp.ne.s32.totalorder %s85, %s86
    %p95 = scmp.eq.s32.totalorder %s14, 0
    %p96 = por %p94, %p95
    %p97 = scmp.ne.s32.totalorder %s85, %s86
    %p98 = scmp.eq.s32.totalorder %s15, 1
    %p99 = por %p97, %p98
    %p101 = scmp.ne.s32.totalorder %s86, %s100
    %p102 = scmp.eq.s32.totalorder %s15, 0
    %p103 = por %p101, %p102
    %s104 = ssub.s32 %s16, %s28
    %p105 = scmp.eq.s32.totalorder %s104, 0
    %s107 = sadd.s32 %s106, 1
    %s108 = scalar_select %p105, %s106, %s107
    %p111 = pneg %p105
    %p112 = scmp.eq.s32.totalorder %s9, 1
    %p113 = por %p111, %p112
    %p114 = scmp.ne.s32.totalorder %s106, %s109
    %p115 = scmp.eq.s32.totalorder %s9, 0
    %p116 = por %p114, %p115
    %p117 = scmp.ne.s32.totalorder %s106, %s109
    %p118 = scmp.eq.s32.totalorder %s14, 1
    %p119 = por %p117, %p118
    %p120 = scmp.ne.s32.totalorder %s109, %s110
    %p121 = scmp.eq.s32.totalorder %s14, 0
    %p122 = por %p120, %p121
    %p123 = scmp.ne.s32.totalorder %s109, %s110
    %p124 = scmp.eq.s32.totalorder %s15, 1
    %p125 = por %p123, %p124
    %p127 = scmp.ne.s32.totalorder %s110, %s126
    %p128 = scmp.eq.s32.totalorder %s15, 0
    %p129 = por %p127, %p128
    %p130 = scmp.le.s32.totalorder 1, %s9
    %p131 = scmp.lt.s32.totalorder %s9, 3
    %p132 = pnand %p130, %p131
    %p133 = pneg %p132
    // Predicated region
    $region9: #{tpu_custom_call.1} parent=5 // pred_check
      _
    $region10: #{tpu_custom_call.1} parent=5 // pred_check_branch
      %135 = sbr.rel (%p132) target = $region12
    $region11: #{tpu_custom_call.1} parent=5 // pred_region
      %s136 = ssub.s32 %s9, 1
      // Predicated region
      $region13: #{tpu_custom_call.1} parent=11 // pred_check
        %p137 = pneg %p75
      $region14: #{tpu_custom_call.1} parent=11 // pred_check_branch
        %139 = sbr.rel (%p137) target = $region16
      $region15: #{tpu_custom_call.1} parent=11 // pred_region
        %s140 = smul.u32 16, %s19
        %p141 = scmp.lt.s32.totalorder %s140, 15
        %s142 = scalar_select %p141, %s140, 15
        %s143 = smul.addr %s142, 4
        %s144 = scalar_lea.vmem %s1, %s143
        %s145 = smul.u32 16, %s19
      $region16: #{tpu_custom_call.1} parent=11 // pred_fallthru
        _
      // Predicated region
      $region17: #{tpu_custom_call.1} parent=11 // pred_check
        %p146 = pneg %p96
      $region18: #{tpu_custom_call.1} parent=11 // pred_check_branch
        %148 = sbr.rel (%p146) target = $region20
      $region19: #{tpu_custom_call.1} parent=11 // pred_region
        _
      $region20: #{tpu_custom_call.1} parent=11 // pred_fallthru
        _
    $region12: #{tpu_custom_call.1} parent=5 // pred_fallthru
      _
    %p149 = scmp.lt.s32.totalorder %s9, 2
    // Predicated region
    $region21: #{tpu_custom_call.1} parent=5 // pred_check
      %p150 = pneg %p149
    $region22: #{tpu_custom_call.1} parent=5 // pred_check_branch
      %152 = sbr.rel (%p150) target = $region24
    $region23: #{tpu_custom_call.1} parent=5 // pred_region
      // Predicated region
      $region25: #{tpu_custom_call.1} parent=23 // pred_check
        %p153 = pneg %p43
      $region26: #{tpu_custom_call.1} parent=23 // pred_check_branch
        %155 = sbr.rel (%p153) target = $region28
      $region27: #{tpu_custom_call.1} parent=23 // pred_region
        %s156 = smul.u32 8, %s16
        %p157 = scmp.lt.s32.totalorder %s156, 15
        %s158 = scalar_select %p157, %s156, 15
        %p159 = scmp.lt.s32.totalorder %s17, 0
        %s160 = scalar_select %p159, %s17, 0
        %s161 = sadd.s32 %s160, %s158
        %s162 = smul.addr %s161, 4
        %s163 = scalar_lea.vmem %s0, %s162
        %s164 = smul.u32 8, %s16
      $region28: #{tpu_custom_call.1} parent=23 // pred_fallthru
        _
    $region24: #{tpu_custom_call.1} parent=5 // pred_fallthru
      _
    %p165 = scmp.le.s32.totalorder 1, %s9
    %p166 = scmp.lt.s32.totalorder %s9, 3
    %p167 = pnand %p165, %p166
    %p168 = pneg %p167
    // Predicated region
    $region29: #{tpu_custom_call.1} parent=5 // pred_check
      _
    $region30: #{tpu_custom_call.1} parent=5 // pred_check_branch
      %170 = sbr.rel (%p167) target = $region32
    $region31: #{tpu_custom_call.1} parent=5 // pred_region
      %s171 = ssub.s32 %s9, 1
      %s172 = smul.u32 8, %s18
      %p173 = scmp.lt.s32.totalorder %s172, 15
      %s174 = scalar_select %p173, %s172, 15
      %p175 = scmp.lt.s32.totalorder %s19, 0
      %s176 = scalar_select %p175, %s19, 0
      %s177 = sadd.s32 %s176, %s174
      %s178 = smul.addr %s177, 4
      %s179 = scalar_lea.vmem %s0, %s178
      %p180 = pneg %p49
      %p181 = pneg %p46
      %s182 = smul.u32 16, %s19
      %p183 = scmp.lt.s32.totalorder %s182, 15
      %s184 = scalar_select %p183, %s182, 15
      %s185 = smul.addr %s184, 4
      %s186 = scalar_lea.vmem %s1, %s185
      %p187 = pneg %p75
      %p188 = pneg %p72
      %p189 = pneg %p96
      %p190 = pneg %p93
      %p191 = pneg %p122
      %p192 = pneg %p119
      %s193 = smul.u32 8, %s18
      %p194 = scmp.lt.s32.totalorder %s193, 15
      %s195 = scalar_select %p194, %s193, 15
      %s196 = smul.addr %s195, 8
      %s197 = scalar_lea.vmem %s3, %s196
      %s198 = smul.u32 8, %s18
      %p199 = scmp.lt.s32.totalorder %s198, 15
      %s200 = scalar_select %p199, %s198, 15
      %p201 = scmp.lt.s32.totalorder %s19, 0
      %s202 = scalar_select %p201, %s19, 0
      %s203 = sadd.s32 %s202, %s200
      %s204 = smul.addr %s203, 4
      %s205 = scalar_lea.vmem %s0, %s204
      %s206 = smul.u32 8, %s18
      %s207 = smul.u32 16, %s19
      %p208 = scmp.lt.s32.totalorder %s207, 15
      %s209 = scalar_select %p208, %s207, 15
      %s210 = smul.addr %s209, 4
      %s211 = scalar_lea.vmem %s1, %s210
      %s212 = smul.u32 16, %s19
      %s213 = smul.u32 8, %s18
      %p214 = scmp.lt.s32.totalorder %s213, 15
      %s215 = scalar_select %p214, %s213, 15
      %s216 = smul.addr %s215, 8
      %s217 = scalar_lea.vmem %s3, %s216
      %s218 = smul.u32 8, %s18
      %p220 = scmp.eq.s32.totalorder %s19, 0
      // Predicated region
      $region33: #{tpu_custom_call.1} parent=31 // pred_check
        %p221 = pneg %p220
      $region34: #{tpu_custom_call.1} parent=31 // pred_check_branch
        %223 = sbr.rel (%p221) target = $region36
      $region35: #{tpu_custom_call.1} parent=31 // pred_region
        %vm224 = vcmask 261120
        %225 = vst.msk [vmem:[#allocation2] sm:$0xff] %vm224, 0.0
        %226 = vst.msk [vmem:[#allocation2 + $0x8] sm:$0xff] %vm224, 0.0
        %227 = vst.msk [vmem:[#allocation2 + $0x10] sm:$0xff] %vm224, 0.0
        %228 = vst.msk [vmem:[#allocation2 + $0x18] sm:$0xff] %vm224, 0.0
        %229 = vst.msk [vmem:[#allocation2 + $0x20] sm:$0xff] %vm224, 0.0
        %230 = vst.msk [vmem:[#allocation2 + $0x28] sm:$0xff] %vm224, 0.0
        %231 = vst.msk [vmem:[#allocation2 + $0x30] sm:$0xff] %vm224, 0.0
        %232 = vst.msk [vmem:[#allocation2 + $0x38] sm:$0xff] %vm224, 0.0
      $region36: #{tpu_custom_call.1} parent=31 // pred_fallthru
        _
      %v233 = vld [vmem:[#allocation2] sm:$0xff]
      %v234 = vld [vmem:[#allocation2 + $0x8] sm:$0xff]
      %v235 = vld [vmem:[#allocation2 + $0x10] sm:$0xff]
      %v236 = vld [vmem:[#allocation2 + $0x18] sm:$0xff]
      %v237 = vld [vmem:[#allocation2 + $0x20] sm:$0xff]
      %v238 = vld [vmem:[#allocation2 + $0x28] sm:$0xff]
      %v239 = vld [vmem:[#allocation2 + $0x30] sm:$0xff]
      %v240 = vld [vmem:[#allocation2 + $0x38] sm:$0xff]
      %v241 = vld [vmem:[%s205] sm:$0xf]
      %v242 = vld [vmem:[%s205 + $0x4] sm:$0xf]
      %v243 = vld [vmem:[%s205 + $0x8] sm:$0xf]
      %v244 = vld [vmem:[%s205 + $0xc] sm:$0xf]
      %v245 = vld [vmem:[%s205 + $0x10] sm:$0xf]
      %v246 = vld [vmem:[%s205 + $0x14] sm:$0xf]
      %v247 = vld [vmem:[%s205 + $0x18] sm:$0xf]
      %v248 = vld [vmem:[%s205 + $0x1c] sm:$0xf]
      %v249 = vld [vmem:[%s211] sm:$0xf]
      %v250 = vld [vmem:[%s211 + $0x4] sm:$0xf]
      %v251 = vld [vmem:[%s211 + $0x8] sm:$0xf]
      %v252 = vld [vmem:[%s211 + $0xc] sm:$0xf]
      %v253 = vld [vmem:[%s211 + $0x10] sm:$0xf]
      %v254 = vld [vmem:[%s211 + $0x14] sm:$0xf]
      %v255 = vld [vmem:[%s211 + $0x18] sm:$0xf]
      %v256 = vld [vmem:[%s211 + $0x1c] sm:$0xf]
      %v257 = vld [vmem:[%s211 + $0x20] sm:$0xf]
      %v258 = vld [vmem:[%s211 + $0x24] sm:$0xf]
      %v259 = vld [vmem:[%s211 + $0x28] sm:$0xf]
      %v260 = vld [vmem:[%s211 + $0x2c] sm:$0xf]
      %v261 = vld [vmem:[%s211 + $0x30] sm:$0xf]
      %v262 = vld [vmem:[%s211 + $0x34] sm:$0xf]
      %v263 = vld [vmem:[%s211 + $0x38] sm:$0xf]
      %v264 = vld [vmem:[%s211 + $0x3c] sm:$0xf]
      %v273 = vunpack.c.l.b16 %v241
      %v274 = vunpack.c.l.b16 %v242
      %v275 = vunpack.c.l.b16 %v243
      %v276 = vunpack.c.l.b16 %v244
      %v277 = vunpack.c.l.b16 %v245
      %v278 = vunpack.c.l.b16 %v246
      %v279 = vunpack.c.l.b16 %v247
      %v280 = vunpack.c.l.b16 %v248
      %v281 = vpack.c.b16 %v274, %v273
      %v282 = vpack.c.b16 %v276, %v275
      %v283 = vpack.c.b16 %v278, %v277
      %v284 = vpack.c.b16 %v280, %v279
      %v305 = vunpack.c.l.b16 %v249
      %v306 = vunpack.c.l.b16 %v250
      %v307 = vunpack.c.l.b16 %v251
      %v308 = vunpack.c.l.b16 %v252
      %v309 = vunpack.c.l.b16 %v253
      %v310 = vunpack.c.l.b16 %v254
      %v311 = vunpack.c.l.b16 %v255
      %v312 = vunpack.c.l.b16 %v256
      %v313 = vunpack.c.l.b16 %v257
      %v314 = vunpack.c.l.b16 %v258
      %v315 = vunpack.c.l.b16 %v259
      %v316 = vunpack.c.l.b16 %v260
      %v317 = vunpack.c.l.b16 %v261
      %v318 = vunpack.c.l.b16 %v262
      %v319 = vunpack.c.l.b16 %v263
      %v320 = vunpack.c.l.b16 %v264
      %v321 = vpack.c.b16 %v306, %v305
      %v322 = vpack.c.b16 %v308, %v307
      %v323 = vpack.c.b16 %v310, %v309
      %v324 = vpack.c.b16 %v312, %v311
      %v325 = vpack.c.b16 %v314, %v313
      %v326 = vpack.c.b16 %v316, %v315
      %v327 = vpack.c.b16 %v318, %v317
      %v328 = vpack.c.b16 %v320, %v319
      %337 = vmatprep.subr.bf16.mxu0 0
      %338 = vmatpush1.bf16.msra.mxu0 %v321
      %339 = vmatprep.subr.bf16.mxu0 0
      %340 = vmatpush1.bf16.msra.mxu0 %v322
      %341 = vmatprep.subr.bf16.mxu0 0
      %342 = vmatpush1.bf16.msra.mxu0 %v323
      %343 = vmatprep.subr.bf16.mxu0 0
      %344 = vmatpush1.bf16.msra.mxu0 %v324
      %345 = vmatprep.subr.bf16.mxu0 0
      %346 = vmatpush1.bf16.msra.mxu0 %v325
      %347 = vmatprep.subr.bf16.mxu0 0
      %348 = vmatpush1.bf16.msra.mxu0 %v326
      %349 = vmatprep.subr.bf16.mxu0 0
      %350 = vmatpush1.bf16.msra.mxu0 %v327
      %351 = vmatprep.subr.bf16.mxu0 0
      %352 = vmatpush1.bf16.msra.mxu0 %v328
      %353 = vmatprep.subr.bf16.mxu0 0
      %354 = vmatpush1.bf16.msra.mxu0 0
      %355 = vmatprep.subr.bf16.mxu0 0
      %356 = vmatpush1.bf16.msra.mxu0 0
      %357 = vmatprep.subr.bf16.mxu0 0
      %358 = vmatpush1.bf16.msra.mxu0 0
      %359 = vmatprep.subr.bf16.mxu0 0
      %360 = vmatpush1.bf16.msra.mxu0 0
      %361 = vmatprep.subr.bf16.mxu0 0
      %362 = vmatpush1.bf16.msra.mxu0 0
      %363 = vmatprep.subr.bf16.mxu0 0
      %364 = vmatpush1.bf16.msra.mxu0 0
      %365 = vmatprep.subr.bf16.mxu0 0
      %366 = vmatpush1.bf16.msra.mxu0 0
      %367 = vmatprep.subr.bf16.mxu0 0
      %368 = vmatpush1.bf16.msra.mxu0 0
      %369 = vmatprep.mubr.bf16.mxu0 0
      %370 = vmatmul.mubr.bf16.gmra.mrb[0].mxu0 %v281
      %v371 = vpop.f32.mrb[0].mxu0
      %v372 = vadd.f32 0.0, %v371
      %v373 = vpop.f32.mrb[0].mxu0
      %v374 = vpop.f32.mrb[0].mxu0
      %v375 = vadd.f32 0.0, %v374
      %v376 = vpop.f32.mrb[0].mxu0
      %377 = vmatprep.mubr.bf16.mxu0 0
      %378 = vmatmul.mubr.bf16.gmra.mrb[0].mxu0 %v282
      %v379 = vpop.f32.mrb[0].mxu0
      %v380 = vadd.f32 0.0, %v379
      %v381 = vpop.f32.mrb[0].mxu0
      %v382 = vpop.f32.mrb[0].mxu0
      %v383 = vadd.f32 0.0, %v382
      %v384 = vpop.f32.mrb[0].mxu0
      %385 = vmatprep.mubr.bf16.mxu0 0
      %386 = vmatmul.mubr.bf16.gmra.mrb[0].mxu0 %v283
      %v387 = vpop.f32.mrb[0].mxu0
      %v388 = vadd.f32 0.0, %v387
      %v389 = vpop.f32.mrb[0].mxu0
      %v390 = vpop.f32.mrb[0].mxu0
      %v391 = vadd.f32 0.0, %v390
      %v392 = vpop.f32.mrb[0].mxu0
      %393 = vmatprep.mubr.bf16.mxu0 0
      %394 = vmatmul.mubr.bf16.gmra.mrb[0].mxu0 %v284
      %v395 = vpop.f32.mrb[0].mxu0
      %v396 = vadd.f32 0.0, %v395
      %v397 = vpop.f32.mrb[0].mxu0
      %v398 = vpop.f32.mrb[0].mxu0
      %v399 = vadd.f32 0.0, %v398
      %v400 = vpop.f32.mrb[0].mxu0
      %401 = vdwg.mxu0
      %v402 = vadd.f32 %v233, %v372
      %v403 = vadd.f32 %v234, %v375
      %v404 = vadd.f32 %v235, %v380
      %v405 = vadd.f32 %v236, %v383
      %v406 = vadd.f32 %v237, %v388
      %v407 = vadd.f32 %v238, %v391
      %v408 = vadd.f32 %v239, %v396
      %v409 = vadd.f32 %v240, %v399
      %vm410 = vcmask 261120
      %411 = vst.msk [vmem:[#allocation2] sm:$0xff] %vm410, %v402
      %412 = vst.msk [vmem:[#allocation2 + $0x8] sm:$0xff] %vm410, %v403
      %413 = vst.msk [vmem:[#allocation2 + $0x10] sm:$0xff] %vm410, %v404
      %414 = vst.msk [vmem:[#allocation2 + $0x18] sm:$0xff] %vm410, %v405
      %415 = vst.msk [vmem:[#allocation2 + $0x20] sm:$0xff] %vm410, %v406
      %416 = vst.msk [vmem:[#allocation2 + $0x28] sm:$0xff] %vm410, %v407
      %417 = vst.msk [vmem:[#allocation2 + $0x30] sm:$0xff] %vm410, %v408
      %418 = vst.msk [vmem:[#allocation2 + $0x38] sm:$0xff] %vm410, %v409
      // Predicated region
      $region37: #{tpu_custom_call.1} parent=31 // pred_check
        %p419 = pneg %p220
      $region38: #{tpu_custom_call.1} parent=31 // pred_check_branch
        %421 = sbr.rel (%p419) target = $region40
      $region39: #{tpu_custom_call.1} parent=31 // pred_region
        %v422 = vld [vmem:[#allocation2] sm:$0xff]
        %v423 = vld [vmem:[#allocation2 + $0x8] sm:$0xff]
        %v424 = vld [vmem:[#allocation2 + $0x10] sm:$0xff]
        %v425 = vld [vmem:[#allocation2 + $0x18] sm:$0xff]
        %v426 = vld [vmem:[#allocation2 + $0x20] sm:$0xff]
        %v427 = vld [vmem:[#allocation2 + $0x28] sm:$0xff]
        %v428 = vld [vmem:[#allocation2 + $0x30] sm:$0xff]
        %v429 = vld [vmem:[#allocation2 + $0x38] sm:$0xff]
        %v430 = vld [vmem:[%s2] sm:$0x1]
        %v432 = vlaneseq
        %v433 = vshrl.u32 %v432, 7
        %v434 = vsub.s32 0, %v433
        %v435 = vrot.slane %v430, %v434
        %v437 = vadd.f32 %v422, %v435
        %v438 = vadd.f32 %v423, %v435
        %v439 = vadd.f32 %v424, %v435
        %v440 = vadd.f32 %v425, %v435
        %v441 = vadd.f32 %v426, %v435
        %v442 = vadd.f32 %v427, %v435
        %v443 = vadd.f32 %v428, %v435
        %v444 = vadd.f32 %v429, %v435
        %445 = vst.msk [vmem:[%s217] sm:$0xff] %vm410, %v437
        %446 = vst.msk [vmem:[%s217 + $0x8] sm:$0xff] %vm410, %v438
        %447 = vst.msk [vmem:[%s217 + $0x10] sm:$0xff] %vm410, %v439
        %448 = vst.msk [vmem:[%s217 + $0x18] sm:$0xff] %vm410, %v440
        %449 = vst.msk [vmem:[%s217 + $0x20] sm:$0xff] %vm410, %v441
        %450 = vst.msk [vmem:[%s217 + $0x28] sm:$0xff] %vm410, %v442
        %451 = vst.msk [vmem:[%s217 + $0x30] sm:$0xff] %vm410, %v443
        %452 = vst.msk [vmem:[%s217 + $0x38] sm:$0xff] %vm410, %v444
      $region40: #{tpu_custom_call.1} parent=31 // pred_fallthru
        _
      %s453 = smul.u32 8, %s18
      %p454 = scmp.lt.s32.totalorder %s453, 15
      %s455 = scalar_select %p454, %s453, 15
      %s456 = smul.addr %s455, 8
      %s457 = scalar_lea.vmem %s3, %s456
      // Predicated region
      $region41: #{tpu_custom_call.1} parent=31 // pred_check
        %p458 = pneg %p119
      $region42: #{tpu_custom_call.1} parent=31 // pred_check_branch
        %460 = sbr.rel (%p458) target = $region44
      $region43: #{tpu_custom_call.1} parent=31 // pred_region
        %s461 = smul.u32 8, %s18
      $region44: #{tpu_custom_call.1} parent=31 // pred_fallthru
        _
    $region32: #{tpu_custom_call.1} parent=5 // pred_fallthru
      _
    %p462 = scmp.le.s32.totalorder 2, %s9
    // Predicated region
    $region45: #{tpu_custom_call.1} parent=5 // pred_check
      %p463 = pneg %p462
    $region46: #{tpu_custom_call.1} parent=5 // pred_check_branch
      %465 = sbr.rel (%p463) target = $region48
    $region47: #{tpu_custom_call.1} parent=5 // pred_region
      %s466 = ssub.s32 %s9, 2
      // Predicated region
      $region49: #{tpu_custom_call.1} parent=47 // pred_check
        %p467 = pneg %p125
      $region50: #{tpu_custom_call.1} parent=47 // pred_check_branch
        %469 = sbr.rel (%p467) target = $region52
      $region51: #{tpu_custom_call.1} parent=47 // pred_region
        %s470 = smul.u32 8, %s20
        %p471 = scmp.lt.s32.totalorder %s470, 15
        %s472 = scalar_select %p471, %s470, 15
        %s473 = smul.addr %s472, 8
        %s474 = scalar_lea.vmem %s3, %s473
      $region52: #{tpu_custom_call.1} parent=47 // pred_fallthru
        _
    $region48: #{tpu_custom_call.1} parent=5 // pred_fallthru
      _
  $region6: #{tpu_custom_call.1} parent=0 // loop_footer
    %s13 = sadd.s32 1, %s9
  $region7: #{tpu_custom_call.1} parent=0 // loop_footer_branch
    %8 = sbr.rel target = $region3
  $region8: #{tpu_custom_call.1} parent=0 // loop_exit
    _

</llo_original>
